<compile_context>
chip_gen: v7x
topology: tpu7x:2x2x1
jax: 0.10.0
libtpu: 0.0.40
codegen_flags: <defaults>
</compile_context>

<pallas_src>
import jax
import jax.numpy as jnp
from jax.experimental import pallas as pl
from jax.experimental.pallas import tpu as pltpu

NUM_CLASSES = 7
FC_IN_FEATURES = 512         # resnet18.fc.in_features
N_PAD = 128                  # lane-dense output width (one 128-lane vreg)
SMALL_BATCH_THRESHOLD = 256  # below this, plain jnp.dot beats a pallas_call


def _round_up(x, m):
    return (x + m - 1) // m * m


def _max_batch_tile():
    """Per-generation batch-tile cap (rows). Conservative on v5e / unknown."""
    try:
        kind = jax.devices()[0].device_kind.lower()
    except Exception:
        return 2048
    if "v6" in kind or "v7" in kind:
        return 4096
    return 2048


def _fc_kernel(x_ref, w_ref, b_ref, o_ref):
    # x_ref: (TB, K) input dtype; w_ref: (K, N_PAD) f32 (resident);
    # b_ref: (1, N_PAD) f32 (resident); o_ref: (TB, N_PAD) f32.
    x = x_ref[...].astype(jnp.float32)          # fused cast (x.to(weight.dtype))
    acc = jnp.dot(x, w_ref[...], preferred_element_type=jnp.float32)
    o_ref[...] = acc + b_ref[...]               # bias broadcast over rows


def pad_fc_params(w_t, b, n_pad=N_PAD):
    """Zero-pad fc params to a lane-dense width. Call ONCE, outside forward."""
    K, N = w_t.shape
    n_pad = _round_up(max(N, n_pad), 128)
    w_pad = jnp.zeros((K, n_pad), jnp.float32).at[:, :N].set(w_t.astype(jnp.float32))
    b_pad = jnp.zeros((1, n_pad), jnp.float32).at[0, :N].set(b.astype(jnp.float32))
    return w_pad, b_pad


def modified_resnet_forward(x, w_pad, b_pad, num_classes=NUM_CLASSES,
                            *, force_pallas=False):
    """Forward of ModifiedResNet: cast -> flatten -> fc.

    x     : (B, C, H, W) any float dtype (NCHW, like PyTorch); C*H*W must be
            fc.in_features (512 for resnet18).
    w_pad : (K, N_PAD) float32 -- fc weight, pre-transposed and zero-padded
            (use pad_fc_params; PyTorch weight layout is (N, K)).
    b_pad : (1, N_PAD) float32 -- fc bias, zero-padded.
    """
    B = x.shape[0]
    x_flat = x.reshape(B, -1)                   # flatten; cast happens in-kernel
    K = x_flat.shape[1]
    n_pad = w_pad.shape[1]
    N = num_classes
    assert w_pad.shape[0] == K, (w_pad.shape, K)

    # Small batches: kernel launch + slicing dominate; plain dot is faster.
    if B < SMALL_BATCH_THRESHOLD and not force_pallas:
        return x_flat.astype(jnp.float32) @ w_pad[:, :N] + b_pad[0, :N]

    # Batch tile: multiple of 8, capped per generation; aim for >= 2 tiles so
    # the "parallel" batch axis can shard across both TCs on v7x.
    max_tb = _max_batch_tile()
    tb = min(max_tb, max(8, _round_up(-(-B // 2), 8)))
    grid = (pl.cdiv(B, tb),)                    # ragged last block, no jnp.pad

    itemsize = jnp.dtype(x_flat.dtype).itemsize
    cost = pl.CostEstimate(
        flops=2 * B * K * n_pad,
        transcendentals=0,
        bytes_accessed=(B * K * itemsize            # x in
                        + K * n_pad * 4 + n_pad * 4  # weight + bias in
                        + B * n_pad * 4),            # out
    )

    # Explicit VMEM budget: 2x double-buffered x + out tiles, resident w/b,
    # plus the in-kernel f32 cast intermediate; generous but below 64 MiB.
    vmem_limit = (48 if tb > 2048 else 32) * 1024 * 1024

    out = pl.pallas_call(
        _fc_kernel,
        out_shape=jax.ShapeDtypeStruct((B, n_pad), jnp.float32),
        grid=grid,
        in_specs=[
            pl.BlockSpec((tb, K), lambda i: (i, 0)),       # batch-tiled input
            pl.BlockSpec((K, n_pad), lambda i: (0, 0)),    # resident weight
            pl.BlockSpec((1, n_pad), lambda i: (0, 0)),    # resident bias
        ],
        out_specs=pl.BlockSpec((tb, n_pad), lambda i: (i, 0)),
        compiler_params=pltpu.CompilerParams(
            dimension_semantics=("parallel",),   # shard batch tiles across TCs
            vmem_limit_bytes=vmem_limit,
        ),
        cost_estimate=cost,
    )(x_flat, w_pad, b_pad)

    # Ragged last block rows (if any) and lane padding are discarded here.
    return out[:, :N]


def init_params(key, in_features=FC_IN_FEATURES, num_classes=NUM_CLASSES):
    """Deterministic synthetic init for fc = nn.Linear(512, num_classes)."""
    kw, kb = jax.random.split(key)
    bound = 1.0 / jnp.sqrt(in_features)  # PyTorch Linear default init range
    w = jax.random.uniform(
        kw, (num_classes, in_features), jnp.float32, -bound, bound
    )  # PyTorch layout (N, K)
    b = jax.random.uniform(kb, (num_classes,), jnp.float32, -bound, bound)
    w_t = jnp.transpose(w)  # (K, N) for the kernel
    return w_t, b


if __name__ == "__main__":
    key = jax.random.PRNGKey(0)
    k_x, k_x2, k_p = jax.random.split(key, 3)

    w_t, b = init_params(k_p)
    w_pad, b_pad = pad_fc_params(w_t, b)   # padded ONCE, reused by every call

    # Small-shape run: NCHW input whose flatten gives fc.in_features = 512
    # features per example (batch=2, channels=2, spatial=16x16).
    B, C, H, W = 2, 2, 16, 16
    assert C * H * W == FC_IN_FEATURES
    x = jax.random.normal(k_x, (B, C, H, W), dtype=jnp.float32)

    out = modified_resnet_forward(x, w_pad, b_pad, force_pallas=True)
    out = jax.block_until_ready(out)

    ref = x.reshape(B, -1).astype(jnp.float32) @ w_t + b.reshape(1, -1)
    assert out.shape == (B, NUM_CLASSES)
    assert jnp.allclose(out, ref, atol=1e-5, rtol=1e-5)

    # Default dispatch at small batch (plain jnp.dot path) must agree too.
    out_small = jax.block_until_ready(modified_resnet_forward(x, w_pad, b_pad))
    assert jnp.allclose(out_small, ref, atol=1e-5, rtol=1e-5)

    # Second Pallas run exercising the ragged last grid block (B not a
    # multiple of the tile) and the fused cast from a non-f32 input dtype.
    B2 = 37
    x2 = jax.random.normal(k_x2, (B2, C, H, W), dtype=jnp.bfloat16)
    out2 = jax.block_until_ready(
        modified_resnet_forward(x2, w_pad, b_pad, force_pallas=True))
    ref2 = x2.reshape(B2, -1).astype(jnp.float32) @ w_t + b.reshape(1, -1)
    assert out2.shape == (B2, NUM_CLASSES)
    assert jnp.allclose(out2, ref2, atol=1e-2, rtol=1e-2)

    print("KERNEL_OK")
</pallas_src>

<mosaic_0001>
module attributes {stable_mosaic.version = 11 : i64} {
  func.func @_fc_kernel(%arg0: i32, %arg1: memref<8x512xf32, #tpu.memory_space<vmem>>, %arg2: memref<512x128xf32, #tpu.memory_space<vmem>>, %arg3: memref<1x128xf32, #tpu.memory_space<vmem>>, %arg4: memref<8x128xf32, #tpu.memory_space<vmem>>) attributes {dimension_semantics = [#tpu.dimension_semantics<parallel>], iteration_bounds = array<i64: 1>, scalar_prefetch = 0 : i64, scratch_operands = 0 : i64, tpu.core_type = #tpu.core_type<tc>, window_params = [{transform_indices = @transform_0, window_bounds = array<i64: 8, 512>}, {pipeline_mode = #tpu.pipeline_mode<synchronous>, transform_indices = @transform_1, window_bounds = array<i64: 512, 128>}, {pipeline_mode = #tpu.pipeline_mode<synchronous>, transform_indices = @transform_2, window_bounds = array<i64: 1, 128>}, {transform_indices = @transform_3, window_bounds = array<i64: 8, 128>}]} {
    %c0 = arith.constant 0 : index
    %c0_0 = arith.constant 0 : index
    %0 = vector.load %arg1[%c0, %c0_0] : memref<8x512xf32, #tpu.memory_space<vmem>>, vector<8x512xf32>
    %c0_1 = arith.constant 0 : index
    %c0_2 = arith.constant 0 : index
    %1 = vector.load %arg2[%c0_1, %c0_2] : memref<512x128xf32, #tpu.memory_space<vmem>>, vector<512x128xf32>
    %cst = arith.constant dense<0.000000e+00> : vector<8x128xf32>
    %2 = tpu.matmul %0, %1, %cst {dimension_numbers = #tpu.dot_dimension_numbers<[1], [0], [0], [1], [0, 0, 1, 1], [], []>} : vector<8x512xf32>, vector<512x128xf32>, vector<8x128xf32> -> vector<8x128xf32>
    %c0_3 = arith.constant 0 : index
    %c0_4 = arith.constant 0 : index
    %3 = vector.load %arg3[%c0_3, %c0_4] : memref<1x128xf32, #tpu.memory_space<vmem>>, vector<1x128xf32>
    %4 = vector.broadcast %3 : vector<1x128xf32> to vector<8x128xf32>
    %5 = arith.addf %2, %4 : vector<8x128xf32>
    %c0_5 = arith.constant 0 : index
    %c0_6 = arith.constant 0 : index
    %6 = vector.load %arg4[%c0_5, %c0_6] : memref<8x128xf32, #tpu.memory_space<vmem>>, vector<8x128xf32>
    tpu.vector_store %arg4[%c0_5, %c0_6], %5 {strides = array<i32>} : memref<8x128xf32, #tpu.memory_space<vmem>>, vector<8x128xf32>,
    return
  }
  func.func @transform_0(%arg0: i32) -> (i32, i32) {
    %c0_i32 = arith.constant 0 : i32
    %c0_i32_0 = arith.constant 0 : i32
    return %arg0, %c0_i32 : i32, i32
  }
  func.func @transform_1(%arg0: i32) -> (i32, i32) {
    %c0_i32 = arith.constant 0 : i32
    %c0_i32_0 = arith.constant 0 : i32
    %c0_i32_1 = arith.constant 0 : i32
    return %c0_i32, %c0_i32_0 : i32, i32
  }
  func.func @transform_2(%arg0: i32) -> (i32, i32) {
    %c0_i32 = arith.constant 0 : i32
    %c0_i32_0 = arith.constant 0 : i32
    %c0_i32_1 = arith.constant 0 : i32
    return %c0_i32, %c0_i32_0 : i32, i32
  }
  func.func @transform_3(%arg0: i32) -> (i32, i32) {
    %c0_i32 = arith.constant 0 : i32
    %c0_i32_0 = arith.constant 0 : i32
    return %arg0, %c0_i32 : i32, i32
  }
}

</mosaic_0001>

<llo_original>
// kernel: tpu_custom_call.1
$region0: #{tpu_custom_call.1}
  #allocation0 [shape = 'u32[]', space=smem, size = 0x4, offset = 0x4, fixed_abs, tag = 'smem constant byte address 0x4 - core index']
  #allocation1 [shape = 'u32[144,128]{1,0:T(1,128)}', space=vmem, size = 0x12000, scoped, tag = 'internal scratch']
  %s0 = inlined_call_operand.hbm [shape: f32[2,512], index: 0, kind: input, shape index: {}]
  %s1 = inlined_call_operand.hbm [shape: f32[512,128], index: 1, kind: input, shape index: {}]
  %s2 = inlined_call_operand.vmem [shape: f32[1,128], index: 2, kind: input, shape index: {}]
  %s3 = inlined_call_operand.hbm [shape: f32[2,128], index: 3, kind: output, shape index: {}]
  %s4 = sld [smem:[#allocation0]]
  $region30: #{tpu_custom_call.1} parent=0
    _
  %s6 = ssub.s32 1, %s4
  %s7 = scalar_select 0, %s6, %s4
  $region1: #{tpu_custom_call.1} parent=0
    #allocation2 [shape = 'u8[16384]{0}', space=vmem, size = 0x4000, scoped, tag = 'input window, operand 0, single buffered']
    #allocation3 [shape = 's32[1]{0}', space=sflag, size = 0x4, scoped, tag = 'scoped memory for tpu_custom_call.1']
    #allocation4 [shape = 's32[1]{0}', space=sflag, size = 0x4, scoped, tag = 'scoped memory for tpu_custom_call.1']
    #allocation5 [shape = 'u8[262144]{0}', space=vmem, size = 0x40000, scoped, tag = 'input window, operand 1, single buffered']
    #allocation6 [shape = 's32[1]{0}', space=sflag, size = 0x4, scoped, tag = 'scoped memory for tpu_custom_call.1']
    #allocation7 [shape = 'u8[4096]{0}', space=vmem, size = 0x1000, scoped, tag = 'output window, operand 0, single buffered']
    %8 = vsyncpa [#allocation3], 0
    %9 = vsyncpa [#allocation6], 0
    %10 = vsyncpa [#allocation4], 0
    // Predicated region
    $region2: #{tpu_custom_call.1} parent=1 // pred_check
      _
    $region3: #{tpu_custom_call.1} parent=1 // pred_check_branch
      %12 = sbr.rel (0) target = $region5
    $region4: #{tpu_custom_call.1} parent=1 // pred_region
      %s14 = ssub.s32 512, 128
      %15 = vsyncadd [#allocation3], %s14
      %s16 = sshll.u32 [#allocation2], 4
      %s17 = int_to_ptr.vmem [resolvable:$true] %s16
      %22 = dma.hbm_to_vmem [thread:$0]  %s0, 128, %s17, [#allocation3], 128, 128, 8
    $region5: #{tpu_custom_call.1} parent=1 // pred_fallthru
      _
    // Predicated region
    $region6: #{tpu_custom_call.1} parent=1 // pred_check
      _
    $region7: #{tpu_custom_call.1} parent=1 // pred_check_branch
      %24 = sbr.rel (0) target = $region9
    $region8: #{tpu_custom_call.1} parent=1 // pred_region
      %s26 = ssub.s32 8192, 8192
      %27 = vsyncadd [#allocation6], %s26
      %s28 = sshll.u32 [#allocation5], 4
      %s29 = int_to_ptr.vmem [resolvable:$true] %s28
      %34 = dma.hbm_to_vmem [thread:$0]  %s1, 8192, %s29, [#allocation6], 128, 128, 8
    $region9: #{tpu_custom_call.1} parent=1 // pred_fallthru
      _
    // Predicated region
    $region10: #{tpu_custom_call.1} parent=1 // pred_check
      _
    $region11: #{tpu_custom_call.1} parent=1 // pred_check_branch
      %36 = sbr.rel (0) target = $region13
    $region12: #{tpu_custom_call.1} parent=1 // pred_region
      _
    $region13: #{tpu_custom_call.1} parent=1 // pred_fallthru
      _
    // Predicated region
    $region14: #{tpu_custom_call.1} parent=1 // pred_check
      _
    $region15: #{tpu_custom_call.1} parent=1 // pred_check_branch
      %38 = sbr.rel (0) target = $region17
    $region16: #{tpu_custom_call.1} parent=1 // pred_region
      %39 = dma.done [#allocation3], 512
    $region17: #{tpu_custom_call.1} parent=1 // pred_fallthru
      _
    // Predicated region
    $region18: #{tpu_custom_call.1} parent=1 // pred_check
      _
    $region19: #{tpu_custom_call.1} parent=1 // pred_check_branch
      %41 = sbr.rel (0) target = $region21
    $region20: #{tpu_custom_call.1} parent=1 // pred_region
      %42 = dma.done [#allocation6], 8192
    $region21: #{tpu_custom_call.1} parent=1 // pred_fallthru
      _
    %v43 = vld [vmem:[#allocation2] sm:$0xff]
    %v44 = vld [vmem:[#allocation2 + $0x8] sm:$0xff]
    %v45 = vld [vmem:[#allocation2 + $0x10] sm:$0xff]
    %v46 = vld [vmem:[#allocation2 + $0x18] sm:$0xff]
    %v47 = vld [vmem:[#allocation5] sm:$0xff]
    %v48 = vld [vmem:[#allocation5 + $0x8] sm:$0xff]
    %v49 = vld [vmem:[#allocation5 + $0x10] sm:$0xff]
    %v50 = vld [vmem:[#allocation5 + $0x18] sm:$0xff]
    %v51 = vld [vmem:[#allocation5 + $0x20] sm:$0xff]
    %v52 = vld [vmem:[#allocation5 + $0x28] sm:$0xff]
    %v53 = vld [vmem:[#allocation5 + $0x30] sm:$0xff]
    %v54 = vld [vmem:[#allocation5 + $0x38] sm:$0xff]
    %v55 = vld [vmem:[#allocation5 + $0x40] sm:$0xff]
    %v56 = vld [vmem:[#allocation5 + $0x48] sm:$0xff]
    %v57 = vld [vmem:[#allocation5 + $0x50] sm:$0xff]
    %v58 = vld [vmem:[#allocation5 + $0x58] sm:$0xff]
    %v59 = vld [vmem:[#allocation5 + $0x60] sm:$0xff]
    %v60 = vld [vmem:[#allocation5 + $0x68] sm:$0xff]
    %v61 = vld [vmem:[#allocation5 + $0x70] sm:$0xff]
    %v62 = vld [vmem:[#allocation5 + $0x78] sm:$0xff]
    %v63 = vld [vmem:[#allocation5 + $0x80] sm:$0xff]
    %v64 = vld [vmem:[#allocation5 + $0x88] sm:$0xff]
    %v65 = vld [vmem:[#allocation5 + $0x90] sm:$0xff]
    %v66 = vld [vmem:[#allocation5 + $0x98] sm:$0xff]
    %v67 = vld [vmem:[#allocation5 + $0xa0] sm:$0xff]
    %v68 = vld [vmem:[#allocation5 + $0xa8] sm:$0xff]
    %v69 = vld [vmem:[#allocation5 + $0xb0] sm:$0xff]
    %v70 = vld [vmem:[#allocation5 + $0xb8] sm:$0xff]
    %v71 = vld [vmem:[#allocation5 + $0xc0] sm:$0xff]
    %v72 = vld [vmem:[#allocation5 + $0xc8] sm:$0xff]
    %v73 = vld [vmem:[#allocation5 + $0xd0] sm:$0xff]
    %v74 = vld [vmem:[#allocation5 + $0xd8] sm:$0xff]
    %v75 = vld [vmem:[#allocation5 + $0xe0] sm:$0xff]
    %v76 = vld [vmem:[#allocation5 + $0xe8] sm:$0xff]
    %v77 = vld [vmem:[#allocation5 + $0xf0] sm:$0xff]
    %v78 = vld [vmem:[#allocation5 + $0xf8] sm:$0xff]
    %v79 = vld [vmem:[#allocation5 + $0x100] sm:$0xff]
    %v80 = vld [vmem:[#allocation5 + $0x108] sm:$0xff]
    %v81 = vld [vmem:[#allocation5 + $0x110] sm:$0xff]
    %v82 = vld [vmem:[#allocation5 + $0x118] sm:$0xff]
    %v83 = vld [vmem:[#allocation5 + $0x120] sm:$0xff]
    %v84 = vld [vmem:[#allocation5 + $0x128] sm:$0xff]
    %v85 = vld [vmem:[#allocation5 + $0x130] sm:$0xff]
    %v86 = vld [vmem:[#allocation5 + $0x138] sm:$0xff]
    %v87 = vld [vmem:[#allocation5 + $0x140] sm:$0xff]
    %v88 = vld [vmem:[#allocation5 + $0x148] sm:$0xff]
    %v89 = vld [vmem:[#allocation5 + $0x150] sm:$0xff]
    %v90 = vld [vmem:[#allocation5 + $0x158] sm:$0xff]
    %v91 = vld [vmem:[#allocation5 + $0x160] sm:$0xff]
    %v92 = vld [vmem:[#allocation5 + $0x168] sm:$0xff]
    %v93 = vld [vmem:[#allocation5 + $0x170] sm:$0xff]
    %v94 = vld [vmem:[#allocation5 + $0x178] sm:$0xff]
    %v95 = vld [vmem:[#allocation5 + $0x180] sm:$0xff]
    %v96 = vld [vmem:[#allocation5 + $0x188] sm:$0xff]
    %v97 = vld [vmem:[#allocation5 + $0x190] sm:$0xff]
    %v98 = vld [vmem:[#allocation5 + $0x198] sm:$0xff]
    %v99 = vld [vmem:[#allocation5 + $0x1a0] sm:$0xff]
    %v100 = vld [vmem:[#allocation5 + $0x1a8] sm:$0xff]
    %v101 = vld [vmem:[#allocation5 + $0x1b0] sm:$0xff]
    %v102 = vld [vmem:[#allocation5 + $0x1b8] sm:$0xff]
    %v103 = vld [vmem:[#allocation5 + $0x1c0] sm:$0xff]
    %v104 = vld [vmem:[#allocation5 + $0x1c8] sm:$0xff]
    %v105 = vld [vmem:[#allocation5 + $0x1d0] sm:$0xff]
    %v106 = vld [vmem:[#allocation5 + $0x1d8] sm:$0xff]
    %v107 = vld [vmem:[#allocation5 + $0x1e0] sm:$0xff]
    %v108 = vld [vmem:[#allocation5 + $0x1e8] sm:$0xff]
    %v109 = vld [vmem:[#allocation5 + $0x1f0] sm:$0xff]
    %v110 = vld [vmem:[#allocation5 + $0x1f8] sm:$0xff]
    %v111 = vld [vmem:[%s2] sm:$0x1]
    %v113 = vlaneseq
    %v114 = vshrl.u32 %v113, 7
    %v115 = vsub.s32 0, %v114
    %v116 = vrot.slane %v111, %v115
    %v122 = vcombine.low %v43, %v44
    %v123 = vcombine.high %v43, %v44
    %v124 = vcombine.low %v45, %v46
    %v125 = vcombine.high %v45, %v46
    %v127 = vunpack.c.l.s4 1983009808
    %v128 = vunpack.c.0.s8 %v127
    %v129 = vlaneseq
    %v130 = vshrl.u32 %v129, 7
    %v131 = vsub.s32 %v128, %v130
    %v132 = vrot.slane %v122, %v131
    %v134 = vunpack.c.l.s4 1983009808
    %v135 = vunpack.c.0.s8 %v134
    %v136 = vlaneseq
    %v137 = vshrl.u32 %v136, 7
    %v138 = vsub.s32 %v135, %v137
    %v139 = vrot.slane %v123, %v138
    %v141 = vunpack.c.l.s4 1983009808
    %v142 = vunpack.c.0.s8 %v141
    %v143 = vlaneseq
    %v144 = vshrl.u32 %v143, 7
    %v145 = vsub.s32 %v142, %v144
    %v146 = vrot.slane %v124, %v145
    %v148 = vunpack.c.l.s4 1983009808
    %v149 = vunpack.c.0.s8 %v148
    %v150 = vlaneseq
    %v151 = vshrl.u32 %v150, 7
    %v152 = vsub.s32 %v149, %v151
    %v153 = vrot.slane %v125, %v152
    %v154 = vcombine.low %v132, %v146
    %v155 = vcombine.high %v132, %v146
    %v156 = vcombine.low %v139, %v153
    %v157 = vcombine.high %v139, %v153
    %162 = vmatprep.subr.mxu0 0.0
    %163 = vmatpush1.msra.mxu0 %v47
    %164 = vmatprep.subr.mxu0 0.0
    %165 = vmatpush1.msra.mxu0 %v48
    %166 = vmatprep.subr.mxu0 0.0
    %167 = vmatpush1.msra.mxu0 %v49
    %168 = vmatprep.subr.mxu0 0.0
    %169 = vmatpush1.msra.mxu0 %v50
    %170 = vmatprep.subr.mxu0 0.0
    %171 = vmatpush1.msra.mxu0 %v51
    %172 = vmatprep.subr.mxu0 0.0
    %173 = vmatpush1.msra.mxu0 %v52
    %174 = vmatprep.subr.mxu0 0.0
    %175 = vmatpush1.msra.mxu0 %v53
    %176 = vmatprep.subr.mxu0 0.0
    %177 = vmatpush1.msra.mxu0 %v54
    %178 = vmatprep.subr.mxu0 0.0
    %179 = vmatpush1.msra.mxu0 %v55
    %180 = vmatprep.subr.mxu0 0.0
    %181 = vmatpush1.msra.mxu0 %v56
    %182 = vmatprep.subr.mxu0 0.0
    %183 = vmatpush1.msra.mxu0 %v57
    %184 = vmatprep.subr.mxu0 0.0
    %185 = vmatpush1.msra.mxu0 %v58
    %186 = vmatprep.subr.mxu0 0.0
    %187 = vmatpush1.msra.mxu0 %v59
    %188 = vmatprep.subr.mxu0 0.0
    %189 = vmatpush1.msra.mxu0 %v60
    %190 = vmatprep.subr.mxu0 0.0
    %191 = vmatpush1.msra.mxu0 %v61
    %192 = vmatprep.subr.mxu0 0.0
    %193 = vmatpush1.msra.mxu0 %v62
    %194 = vmatprep.subr.mxu0 0.0
    %195 = vmatpush1.msra.mxu0 %v63
    %196 = vmatprep.subr.mxu0 0.0
    %197 = vmatpush1.msra.mxu0 %v64
    %198 = vmatprep.subr.mxu0 0.0
    %199 = vmatpush1.msra.mxu0 %v65
    %200 = vmatprep.subr.mxu0 0.0
    %201 = vmatpush1.msra.mxu0 %v66
    %202 = vmatprep.subr.mxu0 0.0
    %203 = vmatpush1.msra.mxu0 %v67
    %204 = vmatprep.subr.mxu0 0.0
    %205 = vmatpush1.msra.mxu0 %v68
    %206 = vmatprep.subr.mxu0 0.0
    %207 = vmatpush1.msra.mxu0 %v69
    %208 = vmatprep.subr.mxu0 0.0
    %209 = vmatpush1.msra.mxu0 %v70
    %210 = vmatprep.subr.mxu0 0.0
    %211 = vmatpush1.msra.mxu0 %v71
    %212 = vmatprep.subr.mxu0 0.0
    %213 = vmatpush1.msra.mxu0 %v72
    %214 = vmatprep.subr.mxu0 0.0
    %215 = vmatpush1.msra.mxu0 %v73
    %216 = vmatprep.subr.mxu0 0.0
    %217 = vmatpush1.msra.mxu0 %v74
    %218 = vmatprep.subr.mxu0 0.0
    %219 = vmatpush1.msra.mxu0 %v75
    %220 = vmatprep.subr.mxu0 0.0
    %221 = vmatpush1.msra.mxu0 %v76
    %222 = vmatprep.subr.mxu0 0.0
    %223 = vmatpush1.msra.mxu0 %v77
    %224 = vmatprep.subr.mxu0 0.0
    %225 = vmatpush1.msra.mxu0 %v78
    %226 = vmatprep.mubr.f32.mxu0 %v155
    %227 = vmatmul.mubr.f32.gmra.mrb[0].mxu0 %v154
    %v228 = vpop.f32.mrb[0].mxu0
    %v229 = vadd.f32 %v116, %v228
    %v230 = vpop.f32.mrb[0].mxu0
    %231 = vdwg.mxu0
    %232 = vmatprep.subr.mxu0 0.0
    %233 = vmatpush1.msra.mxu0 %v79
    %234 = vmatprep.subr.mxu0 0.0
    %235 = vmatpush1.msra.mxu0 %v80
    %236 = vmatprep.subr.mxu0 0.0
    %237 = vmatpush1.msra.mxu0 %v81
    %238 = vmatprep.subr.mxu0 0.0
    %239 = vmatpush1.msra.mxu0 %v82
    %240 = vmatprep.subr.mxu0 0.0
    %241 = vmatpush1.msra.mxu0 %v83
    %242 = vmatprep.subr.mxu0 0.0
    %243 = vmatpush1.msra.mxu0 %v84
    %244 = vmatprep.subr.mxu0 0.0
    %245 = vmatpush1.msra.mxu0 %v85
    %246 = vmatprep.subr.mxu0 0.0
    %247 = vmatpush1.msra.mxu0 %v86
    %248 = vmatprep.subr.mxu0 0.0
    %249 = vmatpush1.msra.mxu0 %v87
    %250 = vmatprep.subr.mxu0 0.0
    %251 = vmatpush1.msra.mxu0 %v88
    %252 = vmatprep.subr.mxu0 0.0
    %253 = vmatpush1.msra.mxu0 %v89
    %254 = vmatprep.subr.mxu0 0.0
    %255 = vmatpush1.msra.mxu0 %v90
    %256 = vmatprep.subr.mxu0 0.0
    %257 = vmatpush1.msra.mxu0 %v91
    %258 = vmatprep.subr.mxu0 0.0
    %259 = vmatpush1.msra.mxu0 %v92
    %260 = vmatprep.subr.mxu0 0.0
    %261 = vmatpush1.msra.mxu0 %v93
    %262 = vmatprep.subr.mxu0 0.0
    %263 = vmatpush1.msra.mxu0 %v94
    %264 = vmatprep.subr.mxu0 0.0
    %265 = vmatpush1.msra.mxu0 %v95
    %266 = vmatprep.subr.mxu0 0.0
    %267 = vmatpush1.msra.mxu0 %v96
    %268 = vmatprep.subr.mxu0 0.0
    %269 = vmatpush1.msra.mxu0 %v97
    %270 = vmatprep.subr.mxu0 0.0
    %271 = vmatpush1.msra.mxu0 %v98
    %272 = vmatprep.subr.mxu0 0.0
    %273 = vmatpush1.msra.mxu0 %v99
    %274 = vmatprep.subr.mxu0 0.0
    %275 = vmatpush1.msra.mxu0 %v100
    %276 = vmatprep.subr.mxu0 0.0
    %277 = vmatpush1.msra.mxu0 %v101
    %278 = vmatprep.subr.mxu0 0.0
    %279 = vmatpush1.msra.mxu0 %v102
    %280 = vmatprep.subr.mxu0 0.0
    %281 = vmatpush1.msra.mxu0 %v103
    %282 = vmatprep.subr.mxu0 0.0
    %283 = vmatpush1.msra.mxu0 %v104
    %284 = vmatprep.subr.mxu0 0.0
    %285 = vmatpush1.msra.mxu0 %v105
    %286 = vmatprep.subr.mxu0 0.0
    %287 = vmatpush1.msra.mxu0 %v106
    %288 = vmatprep.subr.mxu0 0.0
    %289 = vmatpush1.msra.mxu0 %v107
    %290 = vmatprep.subr.mxu0 0.0
    %291 = vmatpush1.msra.mxu0 %v108
    %292 = vmatprep.subr.mxu0 0.0
    %293 = vmatpush1.msra.mxu0 %v109
    %294 = vmatprep.subr.mxu0 0.0
    %295 = vmatpush1.msra.mxu0 %v110
    %296 = vmatprep.mubr.f32.mxu0 %v157
    %297 = vmatmul.mubr.f32.gmra.mrb[0].mxu0 %v156
    %v298 = vpop.f32.mrb[0].mxu0
    %v299 = vadd.f32 %v229, %v298
    %v300 = vpop.f32.mrb[0].mxu0
    %301 = vdwg.mxu0
    %302 = vst [vmem:[#allocation7] sm:$0xff] %v299
    // Predicated region
    $region22: #{tpu_custom_call.1} parent=1 // pred_check
      _
    $region23: #{tpu_custom_call.1} parent=1 // pred_check_branch
      %304 = sbr.rel (0) target = $region25
    $region24: #{tpu_custom_call.1} parent=1 // pred_region
      %s306 = ssub.s32 128, 32
      %307 = vsyncadd [#allocation4], %s306
      %s308 = sshll.u32 [#allocation7], 4
      %s309 = int_to_ptr.vmem [resolvable:$true] %s308
      %314 = dma.vmem_to_hbm [thread:$0]  %s309, 32, %s3, [#allocation4], 32, 32, 2
    $region25: #{tpu_custom_call.1} parent=1 // pred_fallthru
      _
    // Predicated region
    $region26: #{tpu_custom_call.1} parent=1 // pred_check
      _
    $region27: #{tpu_custom_call.1} parent=1 // pred_check_branch
      %316 = sbr.rel (0) target = $region29
    $region28: #{tpu_custom_call.1} parent=1 // pred_region
      %317 = dma.done [#allocation4], 128
    $region29: #{tpu_custom_call.1} parent=1 // pred_fallthru
      _
    %318 = vsyncpa [#allocation3], 1
    %319 = vsyncpa [#allocation6], 1
    %320 = vsyncpa [#allocation4], 1

</llo_original>
